<compile_context>
chip_gen: v5e
topology: v5e:2x2
jax: 0.10.0
libtpu: 0.0.40
codegen_flags: <defaults>
</compile_context>

<pallas_src>
import math

import jax
import jax.numpy as jnp
from jax.experimental import pallas as pl
from jax.experimental.pallas import tpu as pltpu


# --------------------------------------------------------------------------- #
# helpers
# --------------------------------------------------------------------------- #
def _round_up(x, m):
    return (x + m - 1) // m * m


def _sublane(dtype):
    # minimum sublane tile per element width (f32:8, bf16:16, int8/fp8:32)
    return {4: 8, 2: 16, 1: 32}.get(jnp.dtype(dtype).itemsize, 8)


def _tpu_kind():
    try:
        return jax.devices()[0].device_kind.lower()
    except Exception:
        return ""


def _tpu_vmem_bytes(kind):
    try:
        return int(pltpu.get_tpu_info().vmem_capacity_bytes)
    except Exception:
        pass
    if "v7" in kind:
        return 64 << 20
    return 128 << 20


def _default_tiles(kind):
    if "v7" in kind:
        return 512, 512        # fits 64 MiB VMEM, saturates per-TC roofline
    if "v6" in kind:
        return 1024, 1024      # ~650 FLOP/byte crossover needs large tm
    if "v5" in kind:
        return 256, 512        # near roofline already; 128-wide MXU
    return 512, 512


def _est_vmem(tm, th, d_model, hidden, dsz, wsz, f32_direct):
    est = (
        2 * tm * d_model * dsz          # x tiles (double-buffered)
        + 2 * d_model * th * wsz        # W1 column-blocks
        + 2 * th * d_model * wsz        # W2 row-blocks
        + 2 * (hidden + d_model) * 4    # resident f32 biases
        + 2 * tm * d_model * (4 if f32_direct else dsz)   # output tiles
    )
    if not f32_direct:
        est += tm * d_model * 4         # f32 accumulator scratch
    return est


# --------------------------------------------------------------------------- #
# kernels
# --------------------------------------------------------------------------- #
def _ffn_kernel_scratch(x_ref, w1_ref, b1_ref, w2_ref, b2_ref, o_ref, acc_ref):
    # x_ref:  (tm, d_model)      w1_ref: (d_model, th)   b1_ref: (1, hidden)
    # w2_ref: (th, d_model)      b2_ref: (1, d_model)
    # o_ref:  (tm, d_model)      acc_ref: (tm, d_model) f32 scratch
    j = pl.program_id(1)
    th = w1_ref.shape[1]

    # Initialize the accumulator with broadcast b2 (bias added exactly once).
    @pl.when(j == 0)
    def _init():
        acc_ref[...] = jnp.broadcast_to(
            b2_ref[...].astype(jnp.float32), acc_ref.shape
        )

    # First matmul on this hidden block; bias + ReLU in f32.
    h = jnp.dot(x_ref[...], w1_ref[...], preferred_element_type=jnp.float32)
    start = pl.multiple_of(j * th, 128)
    b1_blk = b1_ref[:, pl.ds(start, th)].astype(jnp.float32)
    h = jnp.maximum(h + b1_blk, 0.0)

    # Second matmul: accumulate partial (tm, d_model) contribution in f32.
    acc_ref[...] += jnp.dot(
        h.astype(w2_ref.dtype), w2_ref[...], preferred_element_type=jnp.float32
    )

    # Epilogue: single cast + lane-dense store.
    @pl.when(j == pl.num_programs(1) - 1)
    def _fin():
        o_ref[...] = acc_ref[...].astype(o_ref.dtype)


def _ffn_kernel_f32out(x_ref, w1_ref, b1_ref, w2_ref, b2_ref, o_ref):
    # f32 output: the output block is constant across the hidden axis, so it
    # stays resident in VMEM and doubles as the (exact) f32 accumulator.
    j = pl.program_id(1)
    th = w1_ref.shape[1]

    @pl.when(j == 0)
    def _init():
        o_ref[...] = jnp.broadcast_to(b2_ref[...], o_ref.shape)

    h = jnp.dot(x_ref[...], w1_ref[...], preferred_element_type=jnp.float32)
    start = pl.multiple_of(j * th, 128)
    h = jnp.maximum(h + b1_ref[:, pl.ds(start, th)], 0.0)

    o_ref[...] += jnp.dot(
        h.astype(w2_ref.dtype), w2_ref[...], preferred_element_type=jnp.float32
    )


# --------------------------------------------------------------------------- #
# wrapper
# --------------------------------------------------------------------------- #
def feed_forward(x2d, w1_t, b1, w2_t, b2, *, tm=None, th=None):
    """x2d: (N, d_model); w1_t: (d_model, hidden); w2_t: (hidden, d_model).

    Weights are stored pre-transposed relative to torch.nn.Linear so the kernel
    runs plain row-major matmuls on the MXU.  (If the model permits, cast f32
    weights to bf16 at the call site: accumulation is f32 either way and bf16
    halves weight HBM traffic.)
    """
    N, d_model = x2d.shape
    hidden = w1_t.shape[1]
    assert d_model % 128 == 0, "d_model must be a multiple of 128 (lane dim)"
    assert hidden % 128 == 0, "hidden must be a multiple of 128 (lane dim)"

    kind = _tpu_kind()
    vmem_cap = _tpu_vmem_bytes(kind)
    tm_def, th_def = _default_tiles(kind)
    if tm is None:
        tm = tm_def
    if th is None:
        th = th_def

    out_dtype = x2d.dtype
    f32_direct = jnp.dtype(out_dtype) == jnp.float32
    dsz = jnp.dtype(x2d.dtype).itemsize
    wsz = jnp.dtype(w1_t.dtype).itemsize
    sub = max(_sublane(x2d.dtype), 8)

    # ---- tile sizes -------------------------------------------------------
    # Row tile: multiple of the dtype sublane tile, never larger than padded N.
    tm = max(sub, min(_round_up(tm, sub), _round_up(N, sub)))
    # v7x megacore: make sure both TensorCores get at least one row tile.
    if "v7" in kind and tm >= N and N > sub:
        tm = _round_up(-(-N // 2), sub)
    # Hidden tile: multiple of 128 that divides hidden.
    th = min(th, hidden)
    th = max(128, (th // 128) * 128)
    while hidden % th != 0:
        th -= 128
    th = max(th, 128)

    # Shrink tiles if the estimated VMEM footprint exceeds ~80% of capacity.
    budget = int(0.80 * vmem_cap)
    while _est_vmem(tm, th, d_model, hidden, dsz, wsz, f32_direct) > budget:
        if th > 128:
            th -= 128
            while hidden % th != 0:
                th -= 128
        elif tm > sub:
            tm = max(sub, (tm // 2 // sub) * sub)
        else:
            break

    # Pad rows so the grid divides evenly (zero rows are harmless, sliced off).
    n_pad = _round_up(N, tm)
    if n_pad != N:
        x2d = jnp.pad(x2d, ((0, n_pad - N), (0, 0)))

    b1_2d = b1.reshape(1, hidden).astype(jnp.float32)
    b2_2d = b2.reshape(1, d_model).astype(jnp.float32)

    grid = (n_pad // tm, hidden // th)
    n_row_tiles = grid[0]

    # ---- VMEM limit (generation-aware) ------------------------------------
    est_vmem = _est_vmem(tm, th, d_model, hidden, dsz, wsz, f32_direct)
    vmem_limit = int(min(max(int(1.5 * est_vmem), 16 << 20), int(0.90 * vmem_cap)))
    vmem_limit = min(max(vmem_limit, est_vmem), vmem_cap)

    # ---- cost estimate: weights are re-streamed once per row tile ---------
    cost = pl.CostEstimate(
        flops=4 * n_pad * d_model * hidden,
        transcendentals=0,
        bytes_accessed=(
            n_pad * d_model * dsz                          # x (read once)
            + n_row_tiles * 2 * d_model * hidden * wsz     # W1+W2 per row tile
            + (hidden + d_model) * 4                       # biases (resident)
            + n_pad * d_model * dsz                        # out
        ),
    )

    in_specs = [
        pl.BlockSpec((tm, d_model), lambda i, j: (i, 0)),   # x rows (resident over j)
        pl.BlockSpec((d_model, th), lambda i, j: (0, j)),   # W1^T column-block
        pl.BlockSpec((1, hidden), lambda i, j: (0, 0)),     # full b1, resident
        pl.BlockSpec((th, d_model), lambda i, j: (j, 0)),   # W2^T row-block
        pl.BlockSpec((1, d_model), lambda i, j: (0, 0)),    # b2, resident
    ]
    out_spec = pl.BlockSpec((tm, d_model), lambda i, j: (i, 0))

    if f32_direct:
        kernel = _ffn_kernel_f32out
        scratch = []
    else:
        kernel = _ffn_kernel_scratch
        scratch = [pltpu.VMEM((tm, d_model), jnp.float32)]

    out = pl.pallas_call(
        kernel,
        out_shape=jax.ShapeDtypeStruct((n_pad, d_model), out_dtype),
        grid_spec=pltpu.PrefetchScalarGridSpec(
            num_scalar_prefetch=0,
            grid=grid,
            in_specs=in_specs,
            out_specs=out_spec,
            scratch_shapes=scratch,
        ),
        compiler_params=pltpu.CompilerParams(
            # rows parallel (megacore shards these), hidden reduction last/arbitrary
            dimension_semantics=("parallel", "arbitrary"),
            vmem_limit_bytes=vmem_limit,
        ),
        cost_estimate=cost,
    )(x2d, w1_t, b1_2d, w2_t, b2_2d)

    return out[:N]


# --------------------------------------------------------------------------- #
# self-test
# --------------------------------------------------------------------------- #
if __name__ == "__main__":
    # Small shapes consistent with the module (d_model / hidden scaled down).
    B, S = 2, 8
    d_model, hidden = 128, 256

    key = jax.random.PRNGKey(0)
    kx, kw1, kb1, kw2, kb2 = jax.random.split(key, 5)

    x = jax.random.normal(kx, (B, S, d_model), dtype=jnp.float32)

    # torch Linear: y = x @ W^T + b; weights stored pre-transposed for the kernel.
    w1_t = jax.random.normal(kw1, (d_model, hidden), dtype=jnp.float32) / math.sqrt(d_model)
    b1 = jax.random.normal(kb1, (hidden,), dtype=jnp.float32) * 0.01
    w2_t = jax.random.normal(kw2, (hidden, d_model), dtype=jnp.float32) / math.sqrt(hidden)
    b2 = jax.random.normal(kb2, (d_model,), dtype=jnp.float32) * 0.01

    x2d = x.reshape(B * S, d_model)
    ref2d = jnp.maximum(x2d @ w1_t + b1, 0.0) @ w2_t + b2
    ref = ref2d.reshape(B, S, d_model)

    # f32 path (direct-into-output accumulation; tight reference check).
    out2d = feed_forward(x2d, w1_t, b1, w2_t, b2)
    out = out2d.reshape(B, S, d_model)
    jax.block_until_ready(out)
    assert jnp.allclose(out, ref, atol=1e-4, rtol=1e-4), "f32 mismatch vs reference"

    # bf16 activations/weights, f32 accumulation via VMEM scratch (loose check).
    out_bf = feed_forward(
        x2d.astype(jnp.bfloat16),
        w1_t.astype(jnp.bfloat16),
        b1,
        w2_t.astype(jnp.bfloat16),
        b2,
    ).astype(jnp.float32)
    jax.block_until_ready(out_bf)
    assert jnp.allclose(out_bf, ref2d, atol=2e-1, rtol=5e-2), "bf16 mismatch vs reference"

    print("KERNEL_OK")
</pallas_src>

<mosaic_0001>
module attributes {stable_mosaic.version = 11 : i64} {
  func.func @_ffn_kernel_f32out(%arg0: i32, %arg1: i32, %arg2: memref<16x128xf32, #tpu.memory_space<vmem>>, %arg3: memref<128x256xf32, #tpu.memory_space<vmem>>, %arg4: memref<1x256xf32, #tpu.memory_space<vmem>>, %arg5: memref<256x128xf32, #tpu.memory_space<vmem>>, %arg6: memref<1x128xf32, #tpu.memory_space<vmem>>, %arg7: memref<16x128xf32, #tpu.memory_space<vmem>>) attributes {dimension_semantics = [#tpu.dimension_semantics<parallel>, #tpu.dimension_semantics<arbitrary>], iteration_bounds = array<i64: 1, 1>, scalar_prefetch = 0 : i64, scratch_operands = 0 : i64, tpu.core_type = #tpu.core_type<tc>, window_params = [{transform_indices = @transform_0, window_bounds = array<i64: 16, 128>}, {transform_indices = @transform_1, window_bounds = array<i64: 128, 256>}, {pipeline_mode = #tpu.pipeline_mode<synchronous>, transform_indices = @transform_2, window_bounds = array<i64: 1, 256>}, {transform_indices = @transform_3, window_bounds = array<i64: 256, 128>}, {pipeline_mode = #tpu.pipeline_mode<synchronous>, transform_indices = @transform_4, window_bounds = array<i64: 1, 128>}, {transform_indices = @transform_5, window_bounds = array<i64: 16, 128>}]} {
    %c0_i32 = arith.constant 0 : i32
    %0 = arith.cmpi eq, %arg1, %c0_i32 : i32
    %1 = arith.extui %0 : i1 to i32
    %c0_i32_0 = arith.constant 0 : i32
    %2 = arith.cmpi ne, %1, %c0_i32_0 : i32
    scf.if %2 {
      %c0_13 = arith.constant 0 : index
      %c0_14 = arith.constant 0 : index
      %19 = vector.load %arg6[%c0_13, %c0_14] : memref<1x128xf32, #tpu.memory_space<vmem>>, vector<1x128xf32>
      %20 = vector.shape_cast %19 : vector<1x128xf32> to vector<1x128xf32>
      %21 = vector.broadcast %20 : vector<1x128xf32> to vector<16x128xf32>
      %c0_15 = arith.constant 0 : index
      %c0_16 = arith.constant 0 : index
      %22 = vector.load %arg7[%c0_15, %c0_16] : memref<16x128xf32, #tpu.memory_space<vmem>>, vector<16x128xf32>
      tpu.vector_store %arg7[%c0_15, %c0_16], %21 {strides = array<i32>} : memref<16x128xf32, #tpu.memory_space<vmem>>, vector<16x128xf32>,
    } else {
    }
    %c0 = arith.constant 0 : index
    %c0_1 = arith.constant 0 : index
    %3 = vector.load %arg2[%c0, %c0_1] : memref<16x128xf32, #tpu.memory_space<vmem>>, vector<16x128xf32>
    %c0_2 = arith.constant 0 : index
    %c0_3 = arith.constant 0 : index
    %4 = vector.load %arg3[%c0_2, %c0_3] : memref<128x256xf32, #tpu.memory_space<vmem>>, vector<128x256xf32>
    %cst = arith.constant dense<0.000000e+00> : vector<16x256xf32>
    %5 = tpu.matmul %3, %4, %cst {dimension_numbers = #tpu.dot_dimension_numbers<[1], [0], [0], [1], [0, 0, 1, 1], [], []>} : vector<16x128xf32>, vector<128x256xf32>, vector<16x256xf32> -> vector<16x256xf32>
    %c256_i32 = arith.constant 256 : i32
    %6 = arith.muli %arg1, %c256_i32 : i32
    %7 = tpu.assume_multiple %6, 128 : i32
    %c0_4 = arith.constant 0 : index
    %8 = arith.index_cast %7 : i32 to index
    %9 = vector.load %arg4[%c0_4, %8] : memref<1x256xf32, #tpu.memory_space<vmem>>, vector<1x256xf32>
    %10 = vector.broadcast %9 : vector<1x256xf32> to vector<16x256xf32>
    %11 = arith.addf %5, %10 : vector<16x256xf32>
    %cst_5 = arith.constant 0.000000e+00 : f32
    %12 = vector.broadcast %cst_5 : f32 to vector<16x256xf32>
    %13 = arith.maximumf %11, %12 : vector<16x256xf32>
    %c0_6 = arith.constant 0 : index
    %c0_7 = arith.constant 0 : index
    %14 = vector.load %arg7[%c0_6, %c0_7] : memref<16x128xf32, #tpu.memory_space<vmem>>, vector<16x128xf32>
    %c0_8 = arith.constant 0 : index
    %c0_9 = arith.constant 0 : index
    %15 = vector.load %arg5[%c0_8, %c0_9] : memref<256x128xf32, #tpu.memory_space<vmem>>, vector<256x128xf32>
    %cst_10 = arith.constant dense<0.000000e+00> : vector<16x128xf32>
    %16 = tpu.matmul %13, %15, %cst_10 {dimension_numbers = #tpu.dot_dimension_numbers<[1], [0], [0], [1], [0, 0, 1, 1], [], []>} : vector<16x256xf32>, vector<256x128xf32>, vector<16x128xf32> -> vector<16x128xf32>
    %17 = arith.addf %14, %16 : vector<16x128xf32>
    %c0_11 = arith.constant 0 : index
    %c0_12 = arith.constant 0 : index
    %18 = vector.load %arg7[%c0_11, %c0_12] : memref<16x128xf32, #tpu.memory_space<vmem>>, vector<16x128xf32>
    tpu.vector_store %arg7[%c0_11, %c0_12], %17 {strides = array<i32>} : memref<16x128xf32, #tpu.memory_space<vmem>>, vector<16x128xf32>,
    return
  }
  func.func @transform_0(%arg0: i32, %arg1: i32) -> (i32, i32) {
    %c0_i32 = arith.constant 0 : i32
    %c0_i32_0 = arith.constant 0 : i32
    return %arg0, %c0_i32 : i32, i32
  }
  func.func @transform_1(%arg0: i32, %arg1: i32) -> (i32, i32) {
    %c0_i32 = arith.constant 0 : i32
    %c0_i32_0 = arith.constant 0 : i32
    return %c0_i32, %arg1 : i32, i32
  }
  func.func @transform_2(%arg0: i32, %arg1: i32) -> (i32, i32) {
    %c0_i32 = arith.constant 0 : i32
    %c0_i32_0 = arith.constant 0 : i32
    %c0_i32_1 = arith.constant 0 : i32
    return %c0_i32, %c0_i32_0 : i32, i32
  }
  func.func @transform_3(%arg0: i32, %arg1: i32) -> (i32, i32) {
    %c0_i32 = arith.constant 0 : i32
    %c0_i32_0 = arith.constant 0 : i32
    return %arg1, %c0_i32 : i32, i32
  }
  func.func @transform_4(%arg0: i32, %arg1: i32) -> (i32, i32) {
    %c0_i32 = arith.constant 0 : i32
    %c0_i32_0 = arith.constant 0 : i32
    %c0_i32_1 = arith.constant 0 : i32
    return %c0_i32, %c0_i32_0 : i32, i32
  }
  func.func @transform_5(%arg0: i32, %arg1: i32) -> (i32, i32) {
    %c0_i32 = arith.constant 0 : i32
    %c0_i32_0 = arith.constant 0 : i32
    return %arg0, %c0_i32 : i32, i32
  }
}

</mosaic_0001>

<llo_original>
// kernel: tpu_custom_call.1
$region0: #{tpu_custom_call.1}
  #allocation0 [shape = 'u32[]', space=smem, size = 0x4, offset = 0x4, fixed_abs, tag = 'smem constant byte address 0x4 - core index']
  #allocation1 [shape = 'u32[72,128]{1,0:T(1,128)}', space=vmem, size = 0x9000, scoped, tag = 'internal scratch']
  %s0 = inlined_call_operand.hbm [shape: f32[16,128], index: 0, kind: input, shape index: {}]
  %s1 = inlined_call_operand.hbm [shape: f32[128,256], index: 1, kind: input, shape index: {}]
  %s2 = inlined_call_operand.hbm [shape: f32[1,256], index: 2, kind: input, shape index: {}]
  %s3 = inlined_call_operand.hbm [shape: f32[256,128], index: 3, kind: input, shape index: {}]
  %s4 = inlined_call_operand.vmem [shape: f32[1,128], index: 4, kind: input, shape index: {}]
  %s5 = inlined_call_operand.hbm [shape: f32[16,128], index: 5, kind: output, shape index: {}]
  %s6 = sld [smem:[#allocation0]]
  $region50: #{tpu_custom_call.1} parent=0
    _
  %s8 = ssub.s32 1, %s6
  %s9 = scalar_select 0, %s8, %s6
  $region1: #{tpu_custom_call.1} parent=0
    #allocation2 [shape = 'u8[8192]{0}', space=vmem, size = 0x2000, scoped, tag = 'input window, operand 0, single buffered']
    #allocation3 [shape = 's32[1]{0}', space=sflag, size = 0x4, scoped, tag = 'scoped memory for tpu_custom_call.1']
    #allocation4 [shape = 's32[1]{0}', space=sflag, size = 0x4, scoped, tag = 'scoped memory for tpu_custom_call.1']
    #allocation5 [shape = 'u8[131072]{0}', space=vmem, size = 0x20000, scoped, tag = 'input window, operand 1, single buffered']
    #allocation6 [shape = 's32[1]{0}', space=sflag, size = 0x4, scoped, tag = 'scoped memory for tpu_custom_call.1']
    #allocation7 [shape = 'u8[1024]{0}', space=vmem, size = 0x400, scoped, tag = 'input window, operand 2, single buffered']
    #allocation8 [shape = 'u8[131072]{0}', space=vmem, size = 0x20000, scoped, tag = 'input window, operand 3, single buffered']
    #allocation9 [shape = 's32[1]{0}', space=sflag, size = 0x4, scoped, tag = 'scoped memory for tpu_custom_call.1']
    #allocation10 [shape = 'u8[8192]{0}', space=vmem, size = 0x2000, scoped, tag = 'output window, operand 0, single buffered']
    %10 = vsyncpa [#allocation3], 0
    %11 = vsyncpa [#allocation6], 0
    %12 = vsyncpa [#allocation9], 0
    %13 = vsyncpa [#allocation4], 0
    // Predicated region
    $region2: #{tpu_custom_call.1} parent=1 // pred_check
      _
    $region3: #{tpu_custom_call.1} parent=1 // pred_check_branch
      %15 = sbr.rel (0) target = $region5
    $region4: #{tpu_custom_call.1} parent=1 // pred_region
      %17 = vsyncadd [#allocation3], 0
      %s18 = sshll.u32 %s0, 4
      %s19 = int_to_ptr.hbm [resolvable:$true] %s18
      %s20 = sshll.u32 [#allocation2], 4
      %s21 = int_to_ptr.vmem [resolvable:$true] %s20
      %26 = dma.hbm_to_vmem [thread:$0]  %s19, 256, %s21, [#allocation3], 128, 128, 8
    $region5: #{tpu_custom_call.1} parent=1 // pred_fallthru
      _
    // Predicated region
    $region6: #{tpu_custom_call.1} parent=1 // pred_check
      _
    $region7: #{tpu_custom_call.1} parent=1 // pred_check_branch
      %28 = sbr.rel (0) target = $region9
    $region8: #{tpu_custom_call.1} parent=1 // pred_region
      %30 = vsyncadd [#allocation6], 0
      %s31 = sshll.u32 %s1, 4
      %s32 = int_to_ptr.hbm [resolvable:$true] %s31
      %s33 = sshll.u32 [#allocation5], 4
      %s34 = int_to_ptr.vmem [resolvable:$true] %s33
      %39 = dma.hbm_to_vmem [thread:$0]  %s32, 4096, %s34, [#allocation6], 256, 256, 16
    $region9: #{tpu_custom_call.1} parent=1 // pred_fallthru
      _
    // Predicated region
    $region10: #{tpu_custom_call.1} parent=1 // pred_check
      _
    $region11: #{tpu_custom_call.1} parent=1 // pred_check_branch
      %41 = sbr.rel (0) target = $region13
    $region12: #{tpu_custom_call.1} parent=1 // pred_region
      %43 = vsyncadd [#allocation6], 0
      %s45 = sshll.u32 %s2, 4
      %s46 = int_to_ptr.hbm [resolvable:$true] %s45
      %s47 = sshll.u32 [#allocation7], 4
      %s48 = int_to_ptr.vmem [resolvable:$true] %s47
      %50 = dma.hbm_to_vmem [thread:$0]  %s46, 32, %s48, [#allocation6]
    $region13: #{tpu_custom_call.1} parent=1 // pred_fallthru
      _
    // Predicated region
    $region14: #{tpu_custom_call.1} parent=1 // pred_check
      _
    $region15: #{tpu_custom_call.1} parent=1 // pred_check_branch
      %52 = sbr.rel (0) target = $region17
    $region16: #{tpu_custom_call.1} parent=1 // pred_region
      %54 = vsyncadd [#allocation9], 0
      %s55 = sshll.u32 %s3, 4
      %s56 = int_to_ptr.hbm [resolvable:$true] %s55
      %s57 = sshll.u32 [#allocation8], 4
      %s58 = int_to_ptr.vmem [resolvable:$true] %s57
      %63 = dma.hbm_to_vmem [thread:$0]  %s56, 4096, %s58, [#allocation9], 128, 128, 8
    $region17: #{tpu_custom_call.1} parent=1 // pred_fallthru
      _
    // Predicated region
    $region18: #{tpu_custom_call.1} parent=1 // pred_check
      _
    $region19: #{tpu_custom_call.1} parent=1 // pred_check_branch
      %65 = sbr.rel (0) target = $region21
    $region20: #{tpu_custom_call.1} parent=1 // pred_region
      _
    $region21: #{tpu_custom_call.1} parent=1 // pred_fallthru
      _
    // Predicated region
    $region22: #{tpu_custom_call.1} parent=1 // pred_check
      _
    $region23: #{tpu_custom_call.1} parent=1 // pred_check_branch
      %67 = sbr.rel (0) target = $region25
    $region24: #{tpu_custom_call.1} parent=1 // pred_region
      %69 = dma.done [#allocation3], 256
    $region25: #{tpu_custom_call.1} parent=1 // pred_fallthru
      _
    // Predicated region
    $region26: #{tpu_custom_call.1} parent=1 // pred_check
      _
    $region27: #{tpu_custom_call.1} parent=1 // pred_check_branch
      %71 = sbr.rel (0) target = $region29
    $region28: #{tpu_custom_call.1} parent=1 // pred_region
      %73 = dma.done [#allocation6], 4096
    $region29: #{tpu_custom_call.1} parent=1 // pred_fallthru
      _
    // Predicated region
    $region30: #{tpu_custom_call.1} parent=1 // pred_check
      _
    $region31: #{tpu_custom_call.1} parent=1 // pred_check_branch
      %75 = sbr.rel (0) target = $region33
    $region32: #{tpu_custom_call.1} parent=1 // pred_region
      %77 = dma.done [#allocation6], 32
    $region33: #{tpu_custom_call.1} parent=1 // pred_fallthru
      _
    // Predicated region
    $region34: #{tpu_custom_call.1} parent=1 // pred_check
      _
    $region35: #{tpu_custom_call.1} parent=1 // pred_check_branch
      %79 = sbr.rel (0) target = $region37
    $region36: #{tpu_custom_call.1} parent=1 // pred_region
      %81 = dma.done [#allocation9], 4096
    $region37: #{tpu_custom_call.1} parent=1 // pred_fallthru
      _
    %p82 = scmp.eq.s32.totalorder 0, 0
    // Predicated region
    $region38: #{tpu_custom_call.1} parent=1 // pred_check
      %p83 = pneg %p82
    $region39: #{tpu_custom_call.1} parent=1 // pred_check_branch
      %85 = sbr.rel (%p83) target = $region41
    $region40: #{tpu_custom_call.1} parent=1 // pred_region
      %v86 = vld [vmem:[%s4] sm:$0x1]
      %v88 = vperm.slane %v86, 0
      %90 = vst [vmem:[#allocation10] sm:$0xff] %v88
      %91 = vst [vmem:[#allocation10 + $0x8] sm:$0xff] %v88
    $region41: #{tpu_custom_call.1} parent=1 // pred_fallthru
      _
    %v92 = vld [vmem:[#allocation2] sm:$0xff]
    %v93 = vld [vmem:[#allocation2 + $0x8] sm:$0xff]
    %v94 = vld [vmem:[#allocation5] sm:$0xff]
    %v95 = vld [vmem:[#allocation5 + $0x8] sm:$0xff]
    %v96 = vld [vmem:[#allocation5 + $0x10] sm:$0xff]
    %v97 = vld [vmem:[#allocation5 + $0x18] sm:$0xff]
    %v98 = vld [vmem:[#allocation5 + $0x20] sm:$0xff]
    %v99 = vld [vmem:[#allocation5 + $0x28] sm:$0xff]
    %v100 = vld [vmem:[#allocation5 + $0x30] sm:$0xff]
    %v101 = vld [vmem:[#allocation5 + $0x38] sm:$0xff]
    %v102 = vld [vmem:[#allocation5 + $0x40] sm:$0xff]
    %v103 = vld [vmem:[#allocation5 + $0x48] sm:$0xff]
    %v104 = vld [vmem:[#allocation5 + $0x50] sm:$0xff]
    %v105 = vld [vmem:[#allocation5 + $0x58] sm:$0xff]
    %v106 = vld [vmem:[#allocation5 + $0x60] sm:$0xff]
    %v107 = vld [vmem:[#allocation5 + $0x68] sm:$0xff]
    %v108 = vld [vmem:[#allocation5 + $0x70] sm:$0xff]
    %v109 = vld [vmem:[#allocation5 + $0x78] sm:$0xff]
    %v110 = vld [vmem:[#allocation5 + $0x80] sm:$0xff]
    %v111 = vld [vmem:[#allocation5 + $0x88] sm:$0xff]
    %v112 = vld [vmem:[#allocation5 + $0x90] sm:$0xff]
    %v113 = vld [vmem:[#allocation5 + $0x98] sm:$0xff]
    %v114 = vld [vmem:[#allocation5 + $0xa0] sm:$0xff]
    %v115 = vld [vmem:[#allocation5 + $0xa8] sm:$0xff]
    %v116 = vld [vmem:[#allocation5 + $0xb0] sm:$0xff]
    %v117 = vld [vmem:[#allocation5 + $0xb8] sm:$0xff]
    %v118 = vld [vmem:[#allocation5 + $0xc0] sm:$0xff]
    %v119 = vld [vmem:[#allocation5 + $0xc8] sm:$0xff]
    %v120 = vld [vmem:[#allocation5 + $0xd0] sm:$0xff]
    %v121 = vld [vmem:[#allocation5 + $0xd8] sm:$0xff]
    %v122 = vld [vmem:[#allocation5 + $0xe0] sm:$0xff]
    %v123 = vld [vmem:[#allocation5 + $0xe8] sm:$0xff]
    %v124 = vld [vmem:[#allocation5 + $0xf0] sm:$0xff]
    %v125 = vld [vmem:[#allocation5 + $0xf8] sm:$0xff]
    %s126 = smul.u32 0, 256
    %s127 = sshra.s32 %s126, 7
    %s128 = sand.u32 %s126, 127
    %s129 = scalar_lea.vmem [#allocation7], %s127
    %v130 = vld [vmem:[%s129] sm:$0x3]
    %v132 = vperm.slane %v130, 0
    %v133 = vperm.slane %v130, 1
    %136 = vmatpush.msra.mxu0 %v124
    %137 = vmatpush.msra.mxu0 %v122
    %138 = vmatpush.msra.mxu0 %v120
    %139 = vmatpush.msra.mxu0 %v118
    %140 = vmatpush.msra.mxu0 %v116
    %141 = vmatpush.msra.mxu0 %v114
    %142 = vmatpush.msra.mxu0 %v112
    %143 = vmatpush.msra.mxu0 %v110
    %144 = vmatpush.msra.mxu0 %v108
    %145 = vmatpush.msra.mxu0 %v106
    %146 = vmatpush.msra.mxu0 %v104
    %147 = vmatpush.msra.mxu0 %v102
    %148 = vmatpush.msra.mxu0 %v100
    %149 = vmatpush.msra.mxu0 %v98
    %150 = vmatpush.msra.mxu0 %v96
    %151 = vmatpush.msra.mxu0 %v94
    %152 = vmatmul.f32.gmra.mxu0 %v92
    %v153 = vpop.f32.mrf.mxu0
    %v154 = vadd.f32 %v132, %v153
    %155 = vmatmul.f32.gmra.mxu0 %v93
    %v156 = vpop.f32.mrf.mxu0
    %v157 = vadd.f32 %v132, %v156
    %158 = vdwg.mxu0
    %159 = vmatpush.msra.mxu0 %v125
    %160 = vmatpush.msra.mxu0 %v123
    %161 = vmatpush.msra.mxu0 %v121
    %162 = vmatpush.msra.mxu0 %v119
    %163 = vmatpush.msra.mxu0 %v117
    %164 = vmatpush.msra.mxu0 %v115
    %165 = vmatpush.msra.mxu0 %v113
    %166 = vmatpush.msra.mxu0 %v111
    %167 = vmatpush.msra.mxu0 %v109
    %168 = vmatpush.msra.mxu0 %v107
    %169 = vmatpush.msra.mxu0 %v105
    %170 = vmatpush.msra.mxu0 %v103
    %171 = vmatpush.msra.mxu0 %v101
    %172 = vmatpush.msra.mxu0 %v99
    %173 = vmatpush.msra.mxu0 %v97
    %174 = vmatpush.msra.mxu0 %v95
    %175 = vmatmul.f32.gmra.mxu0 %v92
    %v176 = vpop.f32.mrf.mxu0
    %v177 = vadd.f32 %v133, %v176
    %178 = vmatmul.f32.gmra.mxu0 %v93
    %v179 = vpop.f32.mrf.mxu0
    %v180 = vadd.f32 %v133, %v179
    %181 = vdwg.mxu0
    %v182 = vmax.f32 %v154, 0.0
    %v183 = vmax.f32 %v177, 0.0
    %v184 = vmax.f32 %v157, 0.0
    %v185 = vmax.f32 %v180, 0.0
    %v186 = vld [vmem:[#allocation10] sm:$0xff]
    %v187 = vld [vmem:[#allocation10 + $0x8] sm:$0xff]
    %v188 = vld [vmem:[#allocation8] sm:$0xff]
    %v189 = vld [vmem:[#allocation8 + $0x8] sm:$0xff]
    %v190 = vld [vmem:[#allocation8 + $0x10] sm:$0xff]
    %v191 = vld [vmem:[#allocation8 + $0x18] sm:$0xff]
    %v192 = vld [vmem:[#allocation8 + $0x20] sm:$0xff]
    %v193 = vld [vmem:[#allocation8 + $0x28] sm:$0xff]
    %v194 = vld [vmem:[#allocation8 + $0x30] sm:$0xff]
    %v195 = vld [vmem:[#allocation8 + $0x38] sm:$0xff]
    %v196 = vld [vmem:[#allocation8 + $0x40] sm:$0xff]
    %v197 = vld [vmem:[#allocation8 + $0x48] sm:$0xff]
    %v198 = vld [vmem:[#allocation8 + $0x50] sm:$0xff]
    %v199 = vld [vmem:[#allocation8 + $0x58] sm:$0xff]
    %v200 = vld [vmem:[#allocation8 + $0x60] sm:$0xff]
    %v201 = vld [vmem:[#allocation8 + $0x68] sm:$0xff]
    %v202 = vld [vmem:[#allocation8 + $0x70] sm:$0xff]
    %v203 = vld [vmem:[#allocation8 + $0x78] sm:$0xff]
    %v204 = vld [vmem:[#allocation8 + $0x80] sm:$0xff]
    %v205 = vld [vmem:[#allocation8 + $0x88] sm:$0xff]
    %v206 = vld [vmem:[#allocation8 + $0x90] sm:$0xff]
    %v207 = vld [vmem:[#allocation8 + $0x98] sm:$0xff]
    %v208 = vld [vmem:[#allocation8 + $0xa0] sm:$0xff]
    %v209 = vld [vmem:[#allocation8 + $0xa8] sm:$0xff]
    %v210 = vld [vmem:[#allocation8 + $0xb0] sm:$0xff]
    %v211 = vld [vmem:[#allocation8 + $0xb8] sm:$0xff]
    %v212 = vld [vmem:[#allocation8 + $0xc0] sm:$0xff]
    %v213 = vld [vmem:[#allocation8 + $0xc8] sm:$0xff]
    %v214 = vld [vmem:[#allocation8 + $0xd0] sm:$0xff]
    %v215 = vld [vmem:[#allocation8 + $0xd8] sm:$0xff]
    %v216 = vld [vmem:[#allocation8 + $0xe0] sm:$0xff]
    %v217 = vld [vmem:[#allocation8 + $0xe8] sm:$0xff]
    %v218 = vld [vmem:[#allocation8 + $0xf0] sm:$0xff]
    %v219 = vld [vmem:[#allocation8 + $0xf8] sm:$0xff]
    %220 = vmatpush.msra.mxu0 %v203
    %221 = vmatpush.msra.mxu0 %v202
    %222 = vmatpush.msra.mxu0 %v201
    %223 = vmatpush.msra.mxu0 %v200
    %224 = vmatpush.msra.mxu0 %v199
    %225 = vmatpush.msra.mxu0 %v198
    %226 = vmatpush.msra.mxu0 %v197
    %227 = vmatpush.msra.mxu0 %v196
    %228 = vmatpush.msra.mxu0 %v195
    %229 = vmatpush.msra.mxu0 %v194
    %230 = vmatpush.msra.mxu0 %v193
    %231 = vmatpush.msra.mxu0 %v192
    %232 = vmatpush.msra.mxu0 %v191
    %233 = vmatpush.msra.mxu0 %v190
    %234 = vmatpush.msra.mxu0 %v189
    %235 = vmatpush.msra.mxu0 %v188
    %236 = vmatmul.f32.gmra.mxu0 %v182
    %v237 = vpop.f32.mrf.mxu0
    %v238 = vadd.f32 0.0, %v237
    %239 = vmatmul.f32.gmra.mxu0 %v184
    %v240 = vpop.f32.mrf.mxu0
    %v241 = vadd.f32 0.0, %v240
    %242 = vdwg.mxu0
    %243 = vmatpush.msra.mxu0 %v219
    %244 = vmatpush.msra.mxu0 %v218
    %245 = vmatpush.msra.mxu0 %v217
    %246 = vmatpush.msra.mxu0 %v216
    %247 = vmatpush.msra.mxu0 %v215
    %248 = vmatpush.msra.mxu0 %v214
    %249 = vmatpush.msra.mxu0 %v213
    %250 = vmatpush.msra.mxu0 %v212
    %251 = vmatpush.msra.mxu0 %v211
    %252 = vmatpush.msra.mxu0 %v210
    %253 = vmatpush.msra.mxu0 %v209
    %254 = vmatpush.msra.mxu0 %v208
    %255 = vmatpush.msra.mxu0 %v207
    %256 = vmatpush.msra.mxu0 %v206
    %257 = vmatpush.msra.mxu0 %v205
    %258 = vmatpush.msra.mxu0 %v204
    %259 = vmatmul.f32.gmra.mxu0 %v183
    %v260 = vpop.f32.mrf.mxu0
    %v261 = vadd.f32 %v238, %v260
    %262 = vmatmul.f32.gmra.mxu0 %v185
    %v263 = vpop.f32.mrf.mxu0
    %v264 = vadd.f32 %v241, %v263
    %265 = vdwg.mxu0
    %v266 = vadd.f32 %v186, %v261
    %v267 = vadd.f32 %v187, %v264
    %268 = vst [vmem:[#allocation10] sm:$0xff] %v266
    %269 = vst [vmem:[#allocation10 + $0x8] sm:$0xff] %v267
    // Predicated region
    $region42: #{tpu_custom_call.1} parent=1 // pred_check
      _
    $region43: #{tpu_custom_call.1} parent=1 // pred_check_branch
      %271 = sbr.rel (0) target = $region45
    $region44: #{tpu_custom_call.1} parent=1 // pred_region
      %273 = vsyncadd [#allocation4], 0
      %s274 = sshll.u32 [#allocation10], 4
      %s275 = int_to_ptr.vmem [resolvable:$true] %s274
      %s276 = sshll.u32 %s5, 4
      %s277 = int_to_ptr.hbm [resolvable:$true] %s276
      %282 = dma.vmem_to_hbm [thread:$0]  %s275, 256, %s277, [#allocation4], 128, 128, 8
    $region45: #{tpu_custom_call.1} parent=1 // pred_fallthru
      _
    // Predicated region
    $region46: #{tpu_custom_call.1} parent=1 // pred_check
      _
    $region47: #{tpu_custom_call.1} parent=1 // pred_check_branch
      %284 = sbr.rel (0) target = $region49
    $region48: #{tpu_custom_call.1} parent=1 // pred_region
      %286 = dma.done [#allocation4], 256
    $region49: #{tpu_custom_call.1} parent=1 // pred_fallthru
      _
    %287 = vsyncpa [#allocation3], 1
    %288 = vsyncpa [#allocation6], 1
    %289 = vsyncpa [#allocation9], 1
    %290 = vsyncpa [#allocation4], 1

</llo_original>
